<compile_context>
chip_gen: v7x
topology: tpu7x:2x2x1
jax: 0.10.0
libtpu: 0.0.40
codegen_flags: <defaults>
</compile_context>

<pallas_src>
import functools
import math

import jax
import jax.numpy as jnp
from jax import lax
from jax.experimental import pallas as pl
from jax.experimental.pallas import tpu as pltpu

LRELU_SLOPE = 0.1
_MIB = 1024 * 1024


def get_padding(kernel_size, dilation=1):
    return int((kernel_size * dilation - dilation) / 2)


def _effective_weight(v, g):
    """weight_norm: w = g * v / ||v||_2 (norm over (in_ch, k) per out channel)."""
    norm = jnp.sqrt(jnp.sum(v * v, axis=(1, 2), keepdims=True))
    return g * v / norm


def _vmem_plan(C):
    """(working-set budget, scoped vmem limit, max time tile) per TPU generation."""
    try:
        cap = int(getattr(pltpu.get_tpu_info(), "vmem_capacity_bytes", 0))
    except Exception:
        cap = 0
    if cap >= 128 * _MIB:            # v5e / v6e: 128 MiB VMEM per TensorCore
        return 64 * _MIB, 96 * _MIB, 8192
    # v7x (64 MiB per TensorCore) or unknown: stay conservative, leave Mosaic
    # internal-scratch headroom; smaller max tile for large channel counts.
    return 24 * _MIB, 48 * _MIB, (2048 if C >= 512 else 4096)


def _pick_time_tile(C, T, kernel_size, in_itemsize, mm_itemsize, requested=None,
                    vmem_budget_bytes=24 * _MIB, max_tile=4096):
    """Largest lane-aligned (multiple-of-128) time tile fitting the VMEM budget."""
    cap = (T // 128) * 128           # keep block_shape <= array shape (T >= 128 here)
    if requested is not None:
        tile = int(requested)
    else:
        # f32 live temporaries (win / acc1 / y1 / acc2 / out) + matmul-dtype xt1/xt2
        # + double-buffered in/out tiles, per time column:
        per_col = (5 * 4 + 2 * mm_itemsize + 4 * in_itemsize) * C
        fixed = (2 * kernel_size * C * C * mm_itemsize * 2      # dbuf weights (2 stages)
                 + 2 * 2 * 128 * C * in_itemsize * 2)           # dbuf halo neighbour blocks
        tile = max(vmem_budget_bytes - fixed, 2 * _MIB) // per_col
    tile = min(int(tile), max_tile, cap)
    tile = max(128, (tile // 128) * 128)
    return tile, -(-T // tile)


def _fused_resblock2_kernel(x_ref, xl_ref, xr_ref, w1_ref, w2_ref, b1_ref, b2_ref,
                            o_ref, *, t_tile, t_true, kernel_size, d1, d2,
                            pad1, pad2, matmul_dtype):
    """Both ResBlock2 stages for one (batch, time-tile) grid point."""
    C = o_ref.shape[1]
    tT = t_tile
    halo = pad1 + pad2               # input halo per side (4 for dilations (1, 3))
    L1 = tT + 2 * pad2               # stage-1 output length (tile + stage-2 halo)

    t = pl.program_id(1)

    # ---- haloed input window: halo-sized edges of the neighbour blocks + main tile
    x = x_ref[0].astype(jnp.float32)                      # (C, tT)
    xl = xl_ref[0, :, 128 - halo:].astype(jnp.float32)    # (C, halo)
    xr = xr_ref[0, :, :halo].astype(jnp.float32)          # (C, halo)
    wide = jnp.concatenate([xl, x, xr], axis=1)           # (C, tT + 2*halo)

    # One position mask: zero every column outside the true sequence [0, T).
    # This reproduces Conv1d zero padding at both sequence edges (leaky_relu(0)==0)
    # and neutralizes junk read by partially out-of-bounds boundary blocks, so no
    # wrapper-side padding of x is needed for ragged T.
    s = lax.broadcasted_iota(jnp.int32, (1, tT + 2 * halo), 1)
    pos = t * tT - halo + s
    win = jnp.where((pos >= 0) & (pos < t_true), wide, 0.0)

    # ---- stage 1: y1 = conv_{d1}(leaky_relu(x)) + b1 + x, over tile + stage-2 halo
    xt1 = jnp.where(win >= 0, win, LRELU_SLOPE * win).astype(matmul_dtype)
    acc1 = jnp.dot(w1_ref[0], xt1[:, :L1], preferred_element_type=jnp.float32)
    for j in range(1, kernel_size):                       # static K-tap loop -> MXU matmuls
        acc1 = acc1 + jnp.dot(w1_ref[j], xt1[:, j * d1: j * d1 + L1],
                              preferred_element_type=jnp.float32)
    y1 = acc1 + b1_ref[...] + win[:, pad1: pad1 + L1]

    # stage-1 activations outside [0, T) must read as 0 for stage 2 (zero padding)
    pos1 = t * tT - pad2 + lax.broadcasted_iota(jnp.int32, (1, L1), 1)
    y1 = jnp.where((pos1 >= 0) & (pos1 < t_true), y1, 0.0)

    # ---- stage 2: out = conv_{d2}(leaky_relu(y1)) + b2 + y1, over the tile
    xt2 = jnp.where(y1 >= 0, y1, LRELU_SLOPE * y1).astype(matmul_dtype)
    acc2 = jnp.dot(w2_ref[0], xt2[:, :tT], preferred_element_type=jnp.float32)
    for j in range(1, kernel_size):
        acc2 = acc2 + jnp.dot(w2_ref[j], xt2[:, j * d2: j * d2 + tT],
                              preferred_element_type=jnp.float32)
    out = acc2 + b2_ref[...] + y1[:, pad2: pad2 + tT]

    o_ref[0] = out.astype(o_ref.dtype)


def resblock2_forward(x, params, dilations=(1, 3), kernel_size=3,
                      time_tile=None, matmul_dtype=jnp.float32):
    """ResBlock2 forward. x: (B, C, T); params: [(weight_v, weight_g, bias)] * 2.

    matmul_dtype: MXU feed dtype. float32 (default) for reference-grade numerics;
    bfloat16 is available when the model tolerates it (f32 accumulation either way).
    For an HBM-bound deployment, also feeding x / emitting the output in bfloat16
    (just pass a bf16 x) roughly halves activation traffic.
    """
    assert len(params) == 2 and len(dilations) == 2, "ResBlock2 has exactly two convs"
    B, C, T = x.shape
    d1, d2 = int(dilations[0]), int(dilations[1])
    pad1 = get_padding(kernel_size, d1)
    pad2 = get_padding(kernel_size, d2)
    assert pad1 + pad2 <= 128, "halo must fit in one 128-column neighbour block"

    # Ragged T is handled with partially out-of-bounds boundary blocks + in-kernel
    # masking (no full-tensor pad / output slice). Only T < 128 pads, to one lane tile.
    T_k = T
    if T < 128:
        x = jnp.pad(x, ((0, 0), (0, 0), (0, 128 - T)))
        T_k = 128

    budget, vmem_limit, max_tile = _vmem_plan(C)
    tile, n_tiles = _pick_time_tile(
        C, T_k, kernel_size, x.dtype.itemsize, jnp.dtype(matmul_dtype).itemsize,
        requested=time_tile, vmem_budget_bytes=budget, max_tile=max_tile)

    # weight_norm reparam + (K, C_out, C_in) re-layout; biases stay f32.
    ws, bs = [], []
    for (v, g, b) in params:
        w = _effective_weight(v.astype(jnp.float32), g.astype(jnp.float32))
        ws.append(jnp.transpose(w, (2, 0, 1)).astype(matmul_dtype))  # (K, C_out, C_in)
        bs.append(b.astype(jnp.float32).reshape(C, 1))

    r = tile // 128                  # 128-col blocks per tile (neighbour halo fetch)
    nb = -(-T_k // 128)              # number of (possibly partial) 128-col blocks

    kern = functools.partial(
        _fused_resblock2_kernel,
        t_tile=tile, t_true=T, kernel_size=kernel_size,
        d1=d1, d2=d2, pad1=pad1, pad2=pad2, matmul_dtype=matmul_dtype)

    out = pl.pallas_call(
        kern,
        out_shape=jax.ShapeDtypeStruct((B, C, T_k), x.dtype),
        grid_spec=pltpu.PrefetchScalarGridSpec(
            num_scalar_prefetch=0,
            grid=(B, n_tiles),
            in_specs=[
                pl.BlockSpec((1, C, tile), lambda b, t: (b, 0, t)),
                pl.BlockSpec((1, C, 128),
                             lambda b, t: (b, 0, jnp.maximum(t * r - 1, 0))),
                pl.BlockSpec((1, C, 128),
                             lambda b, t: (b, 0, jnp.minimum((t + 1) * r, nb - 1))),
                pl.BlockSpec((kernel_size, C, C), lambda b, t: (0, 0, 0)),
                pl.BlockSpec((kernel_size, C, C), lambda b, t: (0, 0, 0)),
                pl.BlockSpec((C, 1), lambda b, t: (0, 0)),
                pl.BlockSpec((C, 1), lambda b, t: (0, 0)),
            ],
            out_specs=pl.BlockSpec((1, C, tile), lambda b, t: (b, 0, t)),
        ),
        compiler_params=pltpu.CompilerParams(
            # fully independent tiles -> shards across v7x's two TensorCores
            dimension_semantics=("parallel", "parallel"),
            vmem_limit_bytes=vmem_limit,
        ),
    )(x, x, x, ws[0], ws[1], bs[0], bs[1])

    return out if T_k == T else out[:, :, :T]


def resblock2_reference(x, params, dilations=(1, 3), kernel_size=3):
    """Pure-JAX reference (lax conv, f32, HIGHEST precision) for correctness checking."""
    for (v, g, b), d in zip(params, dilations):
        w = _effective_weight(v, g)
        xt = jnp.where(x >= 0, x, LRELU_SLOPE * x)
        pad = get_padding(kernel_size, d)
        y = lax.conv_general_dilated(
            xt, w, window_strides=(1,), padding=[(pad, pad)],
            rhs_dilation=(d,), dimension_numbers=("NCH", "OIH", "NCH"),
            precision=lax.Precision.HIGHEST)
        x = y + b[None, :, None] + x
    return x


def _make_params(key, C, K, n_convs=2):
    """init_weights-style params: weight_norm (v, g) + bias, deterministic."""
    params = []
    keys = jax.random.split(key, 3 * n_convs)
    bound = 1.0 / math.sqrt(C * K)
    for i in range(n_convs):
        kv, kg, kb = keys[3 * i], keys[3 * i + 1], keys[3 * i + 2]
        v = 0.01 * jax.random.normal(kv, (C, C, K), dtype=jnp.float32)
        g = 0.5 + jax.random.uniform(kg, (C, 1, 1), dtype=jnp.float32)
        b = jax.random.uniform(kb, (C,), dtype=jnp.float32, minval=-bound, maxval=bound)
        params.append((v, g, b))
    return params


def _check_case(key, B, C, T, time_tile=None, matmul_dtype=jnp.float32,
                atol=2e-2, rtol=2e-2):
    kx, kp = jax.random.split(key)
    x = jax.random.normal(kx, (B, C, T), dtype=jnp.float32)
    params = _make_params(kp, C, 3)
    out = jax.block_until_ready(
        resblock2_forward(x, params, time_tile=time_tile, matmul_dtype=matmul_dtype))
    ref = jax.block_until_ready(resblock2_reference(x, params))
    assert out.shape == (B, C, T) and out.dtype == x.dtype
    err = float(jnp.max(jnp.abs(out - ref)))
    # Tolerances cover the MXU operand-truncation error of a 3*C-term contraction
    # over two residual stages (f32 accumulation); exact-path runs are far tighter.
    assert jnp.allclose(out, ref, atol=atol, rtol=rtol), (
        f"mismatch vs reference (max |err| = {err}, atol={atol})")


if __name__ == "__main__":
    root = jax.random.PRNGKey(0)
    k1, k2, k3 = jax.random.split(root, 3)
    # small shapes consistent with the module: (batch, channels, time)
    _check_case(k1, B=2, C=4, T=16, atol=2e-2)
    # tiled path: ragged T (not a multiple of 128 or of the tile), cross-tile halos,
    # partially out-of-bounds boundary blocks, float32 MXU feed
    _check_case(k2, B=2, C=128, T=1600, time_tile=512, atol=5e-2, rtol=5e-2)
    # bf16 MXU feed path (f32 accumulation), default tile selection
    _check_case(k3, B=2, C=128, T=1664, matmul_dtype=jnp.bfloat16, atol=8e-2, rtol=8e-2)
    print("KERNEL_OK")
</pallas_src>

<mosaic_0001>
module attributes {stable_mosaic.version = 11 : i64} {
  func.func @_fused_resblock2_kernel(%arg0: i32, %arg1: i32, %arg2: memref<1x4x128xf32, #tpu.memory_space<vmem>>, %arg3: memref<1x4x128xf32, #tpu.memory_space<vmem>>, %arg4: memref<1x4x128xf32, #tpu.memory_space<vmem>>, %arg5: memref<3x4x4xf32, #tpu.memory_space<vmem>>, %arg6: memref<3x4x4xf32, #tpu.memory_space<vmem>>, %arg7: memref<4x1xf32, #tpu.memory_space<vmem>>, %arg8: memref<4x1xf32, #tpu.memory_space<vmem>>, %arg9: memref<1x4x128xf32, #tpu.memory_space<vmem>>) attributes {dimension_semantics = [#tpu.dimension_semantics<parallel>, #tpu.dimension_semantics<parallel>], iteration_bounds = array<i64: 2, 1>, scalar_prefetch = 0 : i64, scratch_operands = 0 : i64, tpu.core_type = #tpu.core_type<tc>, window_params = [{transform_indices = @transform_0, window_bounds = array<i64: 1, 4, 128>}, {transform_indices = @transform_1, window_bounds = array<i64: 1, 4, 128>}, {transform_indices = @transform_2, window_bounds = array<i64: 1, 4, 128>}, {pipeline_mode = #tpu.pipeline_mode<synchronous>, transform_indices = @transform_3, window_bounds = array<i64: 3, 4, 4>}, {pipeline_mode = #tpu.pipeline_mode<synchronous>, transform_indices = @transform_4, window_bounds = array<i64: 3, 4, 4>}, {pipeline_mode = #tpu.pipeline_mode<synchronous>, transform_indices = @transform_5, window_bounds = array<i64: 4, 1>}, {pipeline_mode = #tpu.pipeline_mode<synchronous>, transform_indices = @transform_6, window_bounds = array<i64: 4, 1>}, {transform_indices = @transform_7, window_bounds = array<i64: 1, 4, 128>}]} {
    %c0 = arith.constant 0 : index
    %c0_0 = arith.constant 0 : index
    %c0_1 = arith.constant 0 : index
    %0 = vector.load %arg2[%c0, %c0_0, %c0_1] : memref<1x4x128xf32, #tpu.memory_space<vmem>>, vector<1x4x128xf32>
    %1 = vector.shape_cast %0 : vector<1x4x128xf32> to vector<4x128xf32>
    %c0_2 = arith.constant 0 : index
    %c0_3 = arith.constant 0 : index
    %c124 = arith.constant 124 : index
    %2 = vector.load %arg3[%c0_2, %c0_3, %c124] : memref<1x4x128xf32, #tpu.memory_space<vmem>>, vector<1x4x4xf32>
    %3 = vector.shape_cast %2 : vector<1x4x4xf32> to vector<4x4xf32>
    %c0_4 = arith.constant 0 : index
    %c0_5 = arith.constant 0 : index
    %c0_6 = arith.constant 0 : index
    %4 = vector.load %arg4[%c0_4, %c0_5, %c0_6] : memref<1x4x128xf32, #tpu.memory_space<vmem>>, vector<1x4x4xf32>
    %5 = vector.shape_cast %4 : vector<1x4x4xf32> to vector<4x4xf32>
    %6 = tpu.concatenate %3, %1, %5 in 1 : vector<4x4xf32>, vector<4x128xf32>, vector<4x4xf32> -> vector<4x136xf32>
    %7 = tpu.iota {dimensions = array<i32: 1>} : vector<1x136xi32>
    %c128_i32 = arith.constant 128 : i32
    %8 = arith.muli %arg1, %c128_i32 : i32
    %c4_i32 = arith.constant 4 : i32
    %9 = arith.subi %8, %c4_i32 : i32
    %10 = vector.broadcast %9 : i32 to vector<1x136xi32>
    %11 = arith.addi %10, %7 : vector<1x136xi32>
    %c0_i32 = arith.constant 0 : i32
    %12 = vector.broadcast %c0_i32 : i32 to vector<1x136xi32>
    %13 = arith.cmpi sge, %11, %12 : vector<1x136xi32>
    %c16_i32 = arith.constant 16 : i32
    %14 = vector.broadcast %c16_i32 : i32 to vector<1x136xi32>
    %15 = arith.cmpi slt, %11, %14 : vector<1x136xi32>
    %16 = arith.andi %13, %15 : vector<1x136xi1>
    %cst = arith.constant 0.000000e+00 : f32
    %17 = vector.shape_cast %16 : vector<1x136xi1> to vector<1x136xi1>
    %18 = vector.broadcast %17 : vector<1x136xi1> to vector<4x136xi1>
    %19 = vector.broadcast %cst : f32 to vector<4x136xf32>
    %20 = arith.select %18, %6, %19 : vector<4x136xi1>, vector<4x136xf32>
    %cst_7 = arith.constant 0.000000e+00 : f32
    %21 = vector.broadcast %cst_7 : f32 to vector<4x136xf32>
    %22 = arith.cmpf oge, %20, %21 : vector<4x136xf32>
    %cst_8 = arith.constant 1.000000e-01 : f32
    %23 = vector.broadcast %cst_8 : f32 to vector<4x136xf32>
    %24 = arith.mulf %23, %20 : vector<4x136xf32>
    %25 = arith.select %22, %20, %24 : vector<4x136xi1>, vector<4x136xf32>
    %c0_9 = arith.constant 0 : index
    %c0_10 = arith.constant 0 : index
    %c0_11 = arith.constant 0 : index
    %26 = vector.load %arg5[%c0_9, %c0_10, %c0_11] : memref<3x4x4xf32, #tpu.memory_space<vmem>>, vector<1x4x4xf32>
    %27 = vector.shape_cast %26 : vector<1x4x4xf32> to vector<4x4xf32>
    %28 = vector.extract_strided_slice %25 {offsets = [0, 0], sizes = [4, 134], strides = [1, 1]} : vector<4x136xf32> to vector<4x134xf32>
    %cst_12 = arith.constant dense<0.000000e+00> : vector<4x134xf32>
    %29 = tpu.matmul %27, %28, %cst_12 {dimension_numbers = #tpu.dot_dimension_numbers<[1], [0], [0], [1], [0, 0, 1, 1], [], []>} : vector<4x4xf32>, vector<4x134xf32>, vector<4x134xf32> -> vector<4x134xf32>
    %c1 = arith.constant 1 : index
    %c0_13 = arith.constant 0 : index
    %c0_14 = arith.constant 0 : index
    %30 = vector.load %arg5[%c1, %c0_13, %c0_14] : memref<3x4x4xf32, #tpu.memory_space<vmem>>, vector<1x4x4xf32>
    %31 = vector.shape_cast %30 : vector<1x4x4xf32> to vector<4x4xf32>
    %32 = vector.extract_strided_slice %25 {offsets = [0, 1], sizes = [4, 134], strides = [1, 1]} : vector<4x136xf32> to vector<4x134xf32>
    %cst_15 = arith.constant dense<0.000000e+00> : vector<4x134xf32>
    %33 = tpu.matmul %31, %32, %cst_15 {dimension_numbers = #tpu.dot_dimension_numbers<[1], [0], [0], [1], [0, 0, 1, 1], [], []>} : vector<4x4xf32>, vector<4x134xf32>, vector<4x134xf32> -> vector<4x134xf32>
    %34 = arith.addf %29, %33 : vector<4x134xf32>
    %c2 = arith.constant 2 : index
    %c0_16 = arith.constant 0 : index
    %c0_17 = arith.constant 0 : index
    %35 = vector.load %arg5[%c2, %c0_16, %c0_17] : memref<3x4x4xf32, #tpu.memory_space<vmem>>, vector<1x4x4xf32>
    %36 = vector.shape_cast %35 : vector<1x4x4xf32> to vector<4x4xf32>
    %37 = vector.extract_strided_slice %25 {offsets = [0, 2], sizes = [4, 134], strides = [1, 1]} : vector<4x136xf32> to vector<4x134xf32>
    %cst_18 = arith.constant dense<0.000000e+00> : vector<4x134xf32>
    %38 = tpu.matmul %36, %37, %cst_18 {dimension_numbers = #tpu.dot_dimension_numbers<[1], [0], [0], [1], [0, 0, 1, 1], [], []>} : vector<4x4xf32>, vector<4x134xf32>, vector<4x134xf32> -> vector<4x134xf32>
    %39 = arith.addf %34, %38 : vector<4x134xf32>
    %c0_19 = arith.constant 0 : index
    %c0_20 = arith.constant 0 : index
    %40 = vector.load %arg7[%c0_19, %c0_20] : memref<4x1xf32, #tpu.memory_space<vmem>>, vector<4x1xf32>
    %41 = vector.broadcast %40 : vector<4x1xf32> to vector<4x134xf32>
    %42 = arith.addf %39, %41 : vector<4x134xf32>
    %43 = vector.extract_strided_slice %20 {offsets = [0, 1], sizes = [4, 134], strides = [1, 1]} : vector<4x136xf32> to vector<4x134xf32>
    %44 = arith.addf %42, %43 : vector<4x134xf32>
    %c128_i32_21 = arith.constant 128 : i32
    %45 = arith.muli %arg1, %c128_i32_21 : i32
    %c3_i32 = arith.constant 3 : i32
    %46 = arith.subi %45, %c3_i32 : i32
    %47 = tpu.iota {dimensions = array<i32: 1>} : vector<1x134xi32>
    %48 = vector.broadcast %46 : i32 to vector<1x134xi32>
    %49 = arith.addi %48, %47 : vector<1x134xi32>
    %c0_i32_22 = arith.constant 0 : i32
    %50 = vector.broadcast %c0_i32_22 : i32 to vector<1x134xi32>
    %51 = arith.cmpi sge, %49, %50 : vector<1x134xi32>
    %c16_i32_23 = arith.constant 16 : i32
    %52 = vector.broadcast %c16_i32_23 : i32 to vector<1x134xi32>
    %53 = arith.cmpi slt, %49, %52 : vector<1x134xi32>
    %54 = arith.andi %51, %53 : vector<1x134xi1>
    %cst_24 = arith.constant 0.000000e+00 : f32
    %55 = vector.shape_cast %54 : vector<1x134xi1> to vector<1x134xi1>
    %56 = vector.broadcast %55 : vector<1x134xi1> to vector<4x134xi1>
    %57 = vector.broadcast %cst_24 : f32 to vector<4x134xf32>
    %58 = arith.select %56, %44, %57 : vector<4x134xi1>, vector<4x134xf32>
    %cst_25 = arith.constant 0.000000e+00 : f32
    %59 = vector.broadcast %cst_25 : f32 to vector<4x134xf32>
    %60 = arith.cmpf oge, %58, %59 : vector<4x134xf32>
    %cst_26 = arith.constant 1.000000e-01 : f32
    %61 = vector.broadcast %cst_26 : f32 to vector<4x134xf32>
    %62 = arith.mulf %61, %58 : vector<4x134xf32>
    %63 = arith.select %60, %58, %62 : vector<4x134xi1>, vector<4x134xf32>
    %c0_27 = arith.constant 0 : index
    %c0_28 = arith.constant 0 : index
    %c0_29 = arith.constant 0 : index
    %64 = vector.load %arg6[%c0_27, %c0_28, %c0_29] : memref<3x4x4xf32, #tpu.memory_space<vmem>>, vector<1x4x4xf32>
    %65 = vector.shape_cast %64 : vector<1x4x4xf32> to vector<4x4xf32>
    %66 = vector.extract_strided_slice %63 {offsets = [0, 0], sizes = [4, 128], strides = [1, 1]} : vector<4x134xf32> to vector<4x128xf32>
    %cst_30 = arith.constant dense<0.000000e+00> : vector<4x128xf32>
    %67 = tpu.matmul %65, %66, %cst_30 {dimension_numbers = #tpu.dot_dimension_numbers<[1], [0], [0], [1], [0, 0, 1, 1], [], []>} : vector<4x4xf32>, vector<4x128xf32>, vector<4x128xf32> -> vector<4x128xf32>
    %c1_31 = arith.constant 1 : index
    %c0_32 = arith.constant 0 : index
    %c0_33 = arith.constant 0 : index
    %68 = vector.load %arg6[%c1_31, %c0_32, %c0_33] : memref<3x4x4xf32, #tpu.memory_space<vmem>>, vector<1x4x4xf32>
    %69 = vector.shape_cast %68 : vector<1x4x4xf32> to vector<4x4xf32>
    %70 = vector.extract_strided_slice %63 {offsets = [0, 3], sizes = [4, 128], strides = [1, 1]} : vector<4x134xf32> to vector<4x128xf32>
    %cst_34 = arith.constant dense<0.000000e+00> : vector<4x128xf32>
    %71 = tpu.matmul %69, %70, %cst_34 {dimension_numbers = #tpu.dot_dimension_numbers<[1], [0], [0], [1], [0, 0, 1, 1], [], []>} : vector<4x4xf32>, vector<4x128xf32>, vector<4x128xf32> -> vector<4x128xf32>
    %72 = arith.addf %67, %71 : vector<4x128xf32>
    %c2_35 = arith.constant 2 : index
    %c0_36 = arith.constant 0 : index
    %c0_37 = arith.constant 0 : index
    %73 = vector.load %arg6[%c2_35, %c0_36, %c0_37] : memref<3x4x4xf32, #tpu.memory_space<vmem>>, vector<1x4x4xf32>
    %74 = vector.shape_cast %73 : vector<1x4x4xf32> to vector<4x4xf32>
    %75 = vector.extract_strided_slice %63 {offsets = [0, 6], sizes = [4, 128], strides = [1, 1]} : vector<4x134xf32> to vector<4x128xf32>
    %cst_38 = arith.constant dense<0.000000e+00> : vector<4x128xf32>
    %76 = tpu.matmul %74, %75, %cst_38 {dimension_numbers = #tpu.dot_dimension_numbers<[1], [0], [0], [1], [0, 0, 1, 1], [], []>} : vector<4x4xf32>, vector<4x128xf32>, vector<4x128xf32> -> vector<4x128xf32>
    %77 = arith.addf %72, %76 : vector<4x128xf32>
    %c0_39 = arith.constant 0 : index
    %c0_40 = arith.constant 0 : index
    %78 = vector.load %arg8[%c0_39, %c0_40] : memref<4x1xf32, #tpu.memory_space<vmem>>, vector<4x1xf32>
    %79 = vector.broadcast %78 : vector<4x1xf32> to vector<4x128xf32>
    %80 = arith.addf %77, %79 : vector<4x128xf32>
    %81 = vector.extract_strided_slice %58 {offsets = [0, 3], sizes = [4, 128], strides = [1, 1]} : vector<4x134xf32> to vector<4x128xf32>
    %82 = arith.addf %80, %81 : vector<4x128xf32>
    %c0_41 = arith.constant 0 : index
    %c0_42 = arith.constant 0 : index
    %c0_43 = arith.constant 0 : index
    %83 = vector.load %arg9[%c0_41, %c0_42, %c0_43] : memref<1x4x128xf32, #tpu.memory_space<vmem>>, vector<1x4x128xf32>
    %84 = vector.shape_cast %83 : vector<1x4x128xf32> to vector<4x128xf32>
    %85 = vector.shape_cast %82 : vector<4x128xf32> to vector<1x4x128xf32>
    tpu.vector_store %arg9[%c0_41, %c0_42, %c0_43], %85 {strides = array<i32>} : memref<1x4x128xf32, #tpu.memory_space<vmem>>, vector<1x4x128xf32>,
    return
  }
  func.func @transform_0(%arg0: i32, %arg1: i32) -> (i32, i32, i32) {
    %c0_i32 = arith.constant 0 : i32
    %c0_i32_0 = arith.constant 0 : i32
    return %arg0, %c0_i32, %arg1 : i32, i32, i32
  }
  func.func @transform_1(%arg0: i32, %arg1: i32) -> (i32, i32, i32) {
    %c1_i32 = arith.constant 1 : i32
    %0 = arith.muli %arg1, %c1_i32 : i32
    %c1_i32_0 = arith.constant 1 : i32
    %1 = arith.subi %0, %c1_i32_0 : i32
    %c0_i32 = arith.constant 0 : i32
    %2 = arith.maxsi %1, %c0_i32 : i32
    %c0_i32_1 = arith.constant 0 : i32
    %c0_i32_2 = arith.constant 0 : i32
    return %arg0, %c0_i32_1, %2 : i32, i32, i32
  }
  func.func @transform_2(%arg0: i32, %arg1: i32) -> (i32, i32, i32) {
    %c1_i32 = arith.constant 1 : i32
    %0 = arith.addi %arg1, %c1_i32 : i32
    %c1_i32_0 = arith.constant 1 : i32
    %1 = arith.muli %0, %c1_i32_0 : i32
    %c0_i32 = arith.constant 0 : i32
    %2 = arith.minsi %1, %c0_i32 : i32
    %c0_i32_1 = arith.constant 0 : i32
    %c0_i32_2 = arith.constant 0 : i32
    return %arg0, %c0_i32_1, %2 : i32, i32, i32
  }
  func.func @transform_3(%arg0: i32, %arg1: i32) -> (i32, i32, i32) {
    %c0_i32 = arith.constant 0 : i32
    %c0_i32_0 = arith.constant 0 : i32
    %c0_i32_1 = arith.constant 0 : i32
    %c0_i32_2 = arith.constant 0 : i32
    return %c0_i32, %c0_i32_0, %c0_i32_1 : i32, i32, i32
  }
  func.func @transform_4(%arg0: i32, %arg1: i32) -> (i32, i32, i32) {
    %c0_i32 = arith.constant 0 : i32
    %c0_i32_0 = arith.constant 0 : i32
    %c0_i32_1 = arith.constant 0 : i32
    %c0_i32_2 = arith.constant 0 : i32
    return %c0_i32, %c0_i32_0, %c0_i32_1 : i32, i32, i32
  }
  func.func @transform_5(%arg0: i32, %arg1: i32) -> (i32, i32) {
    %c0_i32 = arith.constant 0 : i32
    %c0_i32_0 = arith.constant 0 : i32
    %c0_i32_1 = arith.constant 0 : i32
    return %c0_i32, %c0_i32_0 : i32, i32
  }
  func.func @transform_6(%arg0: i32, %arg1: i32) -> (i32, i32) {
    %c0_i32 = arith.constant 0 : i32
    %c0_i32_0 = arith.constant 0 : i32
    %c0_i32_1 = arith.constant 0 : i32
    return %c0_i32, %c0_i32_0 : i32, i32
  }
  func.func @transform_7(%arg0: i32, %arg1: i32) -> (i32, i32, i32) {
    %c0_i32 = arith.constant 0 : i32
    %c0_i32_0 = arith.constant 0 : i32
    return %arg0, %c0_i32, %arg1 : i32, i32, i32
  }
}

</mosaic_0001>

<llo_original>
// kernel: tpu_custom_call.1
$region0: #{tpu_custom_call.1}
  #allocation0 [shape = 'u32[]', space=smem, size = 0x4, offset = 0x4, fixed_abs, tag = 'smem constant byte address 0x4 - core index']
  #allocation1 [shape = 'u32[144,128]{1,0:T(1,128)}', space=vmem, size = 0x12000, scoped, tag = 'internal scratch']
  %s0 = inlined_call_operand.hbm [shape: f32[2,4,128], index: 0, kind: input, shape index: {}]
  %s1 = inlined_call_operand.hbm [shape: f32[2,4,128], index: 1, kind: input, shape index: {}]
  %s2 = inlined_call_operand.hbm [shape: f32[2,4,128], index: 2, kind: input, shape index: {}]
  %s3 = inlined_call_operand.vmem [shape: f32[3,4,4], index: 3, kind: input, shape index: {}]
  %s4 = inlined_call_operand.vmem [shape: f32[3,4,4], index: 4, kind: input, shape index: {}]
  %s5 = inlined_call_operand.vmem [shape: f32[4,1], index: 5, kind: input, shape index: {}]
  %s6 = inlined_call_operand.vmem [shape: f32[4,1], index: 6, kind: input, shape index: {}]
  %s7 = inlined_call_operand.hbm [shape: f32[2,4,128], index: 7, kind: output, shape index: {}]
  %s8 = sld [smem:[#allocation0]]
  $region73: #{tpu_custom_call.1} parent=0
    _
  %s10 = ssub.s32 1, %s8
  %s11 = scalar_select 0, %s10, %s8
  $region1: #{tpu_custom_call.1} parent=0
    #allocation2 [shape = 'u8[4096]{0}', space=vmem, size = 0x1000, scoped, tag = 'input window, operand 0']
    #allocation3 [shape = 's32[2]{0}', space=sflag, size = 0x8, scoped, tag = 'scoped memory for tpu_custom_call.1']
    #allocation4 [shape = 's32[2]{0}', space=sflag, size = 0x8, scoped, tag = 'scoped memory for tpu_custom_call.1']
    #allocation5 [shape = 'u8[4096]{0}', space=vmem, size = 0x1000, scoped, tag = 'input window, operand 1']
    #allocation6 [shape = 's32[2]{0}', space=sflag, size = 0x8, scoped, tag = 'scoped memory for tpu_custom_call.1']
    #allocation7 [shape = 'u8[4096]{0}', space=vmem, size = 0x1000, scoped, tag = 'input window, operand 2']
    #allocation8 [shape = 'u8[4096]{0}', space=vmem, size = 0x1000, scoped, tag = 'output window, operand 0']
    %12 = vsyncpa [#allocation3], 0
    %s13 = scalar_lea.sflag [#allocation3], 1
    %14 = vsyncpa %s13, 0
    %15 = vsyncpa [#allocation6], 0
    %s16 = scalar_lea.sflag [#allocation6], 1
    %17 = vsyncpa %s16, 0
    %18 = vsyncpa [#allocation4], 0
    %s19 = scalar_lea.sflag [#allocation4], 1
    %20 = vsyncpa %s19, 0
    loop: start=0, step=1, limit=4
    $region2: #{tpu_custom_call.1} parent=1 // loop_pre_header
      _
    $region3: #{tpu_custom_call.1} parent=1 // loop_header
      %s22 = sphi 0, %s26
      %p23 = scmp.ge.s32.totalorder %s22, 4
      %s29 = sphi 0, %s41
      %s30 = sphi 0, %s37
      %s31 = sphi 0, %s29
      %s32 = sphi 0, %s30
      %s33 = sphi 0, %s31
      %s34 = sphi 0, %s32
      %s46 = sphi 0, %s48
      %s49 = sphi 0, %s46
      %s50 = sphi 0, %s49
      %s66 = sphi 0, %s50
      %s80 = sphi 0, %s82
      %s83 = sphi 0, %s80
      %s84 = sphi 0, %s83
      %s100 = sphi 0, %s84
      %s114 = sphi 0, %s116
      %s117 = sphi 0, %s114
      %s118 = sphi 0, %s117
      %s134 = sphi 0, %s118
      %s138 = sphi 0, %s138
      %s140 = sphi 0, %s138
      %s141 = sphi 0, %s140
      %s155 = sphi 0, %s141
      %s159 = sphi 0, %s159
      %s161 = sphi 0, %s159
      %s162 = sphi 0, %s161
      %s176 = sphi 0, %s162
      %s180 = sphi 0, %s180
      %s182 = sphi 0, %s180
      %s183 = sphi 0, %s182
      %s197 = sphi 0, %s183
      %s201 = sphi 0, %s201
      %s203 = sphi 0, %s201
      %s204 = sphi 0, %s203
      %s218 = sphi 0, %s204
      %s226 = sphi 0, %s228
      %s229 = sphi 0, %s226
      %s230 = sphi 0, %s229
      %s246 = sphi 0, %s230
    $region4: #{tpu_custom_call.1} parent=1 // loop_header_branch
      %25 = sbr.rel (%p23) target = $region8
    $region5: #{tpu_custom_call.1} parent=1 // loop_body
      %s27 = ssub.s32 %s22, 1
      %s28 = ssub.s32 %s22, 2
      %s35 = sadd.s32 1, %s30
      %p36 = scmp.ge.s32.totalorder %s35, 1
      %s37 = scalar_select %p36, 0, %s35
      %s38 = sadd.s32 1, %s29
      %s39 = scalar_select %p36, %s38, %s29
      %p40 = scmp.ge.s32.totalorder %s39, 2
      %s41 = scalar_select %p40, 0, %s39
      %s42 = ssub.s32 %s29, %s41
      %s43 = ssub.s32 %s30, %s37
      %s44 = sor.u32 %s42, %s43
      %p45 = scmp.eq.s32.totalorder %s44, 0
      %s47 = sadd.s32 %s46, 1
      %s48 = scalar_select %p45, %s46, %s47
      %p51 = pneg %p45
      %p52 = scmp.eq.s32.totalorder %s22, 1
      %p53 = por %p51, %p52
      %p54 = scmp.ne.s32.totalorder %s46, %s49
      %p55 = scmp.eq.s32.totalorder %s22, 0
      %p56 = por %p54, %p55
      %p57 = scmp.ne.s32.totalorder %s46, %s49
      %p58 = scmp.eq.s32.totalorder %s27, 1
      %p59 = por %p57, %p58
      %p60 = scmp.ne.s32.totalorder %s49, %s50
      %p61 = scmp.eq.s32.totalorder %s27, 0
      %p62 = por %p60, %p61
      %p63 = scmp.ne.s32.totalorder %s49, %s50
      %p64 = scmp.eq.s32.totalorder %s28, 1
      %p65 = por %p63, %p64
      %p67 = scmp.ne.s32.totalorder %s50, %s66
      %p68 = scmp.eq.s32.totalorder %s28, 0
      %p69 = por %p67, %p68
      %s70 = ssub.s32 %s30, 1
      %p71 = scmp.gt.s32.totalorder %s70, 0
      %s72 = scalar_select %p71, %s70, 0
      %s73 = ssub.s32 %s37, 1
      %p74 = scmp.gt.s32.totalorder %s73, 0
      %s75 = scalar_select %p74, %s73, 0
      %s76 = ssub.s32 %s29, %s41
      %s77 = ssub.s32 %s72, %s75
      %s78 = sor.u32 %s76, %s77
      %p79 = scmp.eq.s32.totalorder %s78, 0
      %s81 = sadd.s32 %s80, 1
      %s82 = scalar_select %p79, %s80, %s81
      %p85 = pneg %p79
      %p86 = scmp.eq.s32.totalorder %s22, 1
      %p87 = por %p85, %p86
      %p88 = scmp.ne.s32.totalorder %s80, %s83
      %p89 = scmp.eq.s32.totalorder %s22, 0
      %p90 = por %p88, %p89
      %p91 = scmp.ne.s32.totalorder %s80, %s83
      %p92 = scmp.eq.s32.totalorder %s27, 1
      %p93 = por %p91, %p92
      %p94 = scmp.ne.s32.totalorder %s83, %s84
      %p95 = scmp.eq.s32.totalorder %s27, 0
      %p96 = por %p94, %p95
      %p97 = scmp.ne.s32.totalorder %s83, %s84
      %p98 = scmp.eq.s32.totalorder %s28, 1
      %p99 = por %p97, %p98
      %p101 = scmp.ne.s32.totalorder %s84, %s100
      %p102 = scmp.eq.s32.totalorder %s28, 0
      %p103 = por %p101, %p102
      %s104 = sadd.s32 %s30, 1
      %p105 = scmp.lt.s32.totalorder %s104, 0
      %s106 = scalar_select %p105, %s104, 0
      %s107 = sadd.s32 %s37, 1
      %p108 = scmp.lt.s32.totalorder %s107, 0
      %s109 = scalar_select %p108, %s107, 0
      %s110 = ssub.s32 %s29, %s41
      %s111 = ssub.s32 %s106, %s109
      %s112 = sor.u32 %s110, %s111
      %p113 = scmp.eq.s32.totalorder %s112, 0
      %s115 = sadd.s32 %s114, 1
      %s116 = scalar_select %p113, %s114, %s115
      %p119 = pneg %p113
      %p120 = scmp.eq.s32.totalorder %s22, 1
      %p121 = por %p119, %p120
      %p122 = scmp.ne.s32.totalorder %s114, %s117
      %p123 = scmp.eq.s32.totalorder %s22, 0
      %p124 = por %p122, %p123
      %p125 = scmp.ne.s32.totalorder %s114, %s117
      %p126 = scmp.eq.s32.totalorder %s27, 1
      %p127 = por %p125, %p126
      %p128 = scmp.ne.s32.totalorder %s117, %s118
      %p129 = scmp.eq.s32.totalorder %s27, 0
      %p130 = por %p128, %p129
      %p131 = scmp.ne.s32.totalorder %s117, %s118
      %p132 = scmp.eq.s32.totalorder %s28, 1
      %p133 = por %p131, %p132
      %p135 = scmp.ne.s32.totalorder %s118, %s134
      %p136 = scmp.eq.s32.totalorder %s28, 0
      %p137 = por %p135, %p136
      %s139 = sadd.s32 %s138, 1
      %p142 = scmp.eq.s32.totalorder %s22, 1
      %p143 = scmp.ne.s32.totalorder %s138, %s140
      %p144 = scmp.eq.s32.totalorder %s22, 0
      %p145 = por %p143, %p144
      %p146 = scmp.ne.s32.totalorder %s138, %s140
      %p147 = scmp.eq.s32.totalorder %s27, 1
      %p148 = por %p146, %p147
      %p149 = scmp.ne.s32.totalorder %s140, %s141
      %p150 = scmp.eq.s32.totalorder %s27, 0
      %p151 = por %p149, %p150
      %p152 = scmp.ne.s32.totalorder %s140, %s141
      %p153 = scmp.eq.s32.totalorder %s28, 1
      %p154 = por %p152, %p153
      %p156 = scmp.ne.s32.totalorder %s141, %s155
      %p157 = scmp.eq.s32.totalorder %s28, 0
      %p158 = por %p156, %p157
      %s160 = sadd.s32 %s159, 1
      %p163 = scmp.eq.s32.totalorder %s22, 1
      %p164 = scmp.ne.s32.totalorder %s159, %s161
      %p165 = scmp.eq.s32.totalorder %s22, 0
      %p166 = por %p164, %p165
      %p167 = scmp.ne.s32.totalorder %s159, %s161
      %p168 = scmp.eq.s32.totalorder %s27, 1
      %p169 = por %p167, %p168
      %p170 = scmp.ne.s32.totalorder %s161, %s162
      %p171 = scmp.eq.s32.totalorder %s27, 0
      %p172 = por %p170, %p171
      %p173 = scmp.ne.s32.totalorder %s161, %s162
      %p174 = scmp.eq.s32.totalorder %s28, 1
      %p175 = por %p173, %p174
      %p177 = scmp.ne.s32.totalorder %s162, %s176
      %p178 = scmp.eq.s32.totalorder %s28, 0
      %p179 = por %p177, %p178
      %s181 = sadd.s32 %s180, 1
      %p184 = scmp.eq.s32.totalorder %s22, 1
      %p185 = scmp.ne.s32.totalorder %s180, %s182
      %p186 = scmp.eq.s32.totalorder %s22, 0
      %p187 = por %p185, %p186
      %p188 = scmp.ne.s32.totalorder %s180, %s182
      %p189 = scmp.eq.s32.totalorder %s27, 1
      %p190 = por %p188, %p189
      %p191 = scmp.ne.s32.totalorder %s182, %s183
      %p192 = scmp.eq.s32.totalorder %s27, 0
      %p193 = por %p191, %p192
      %p194 = scmp.ne.s32.totalorder %s182, %s183
      %p195 = scmp.eq.s32.totalorder %s28, 1
      %p196 = por %p194, %p195
      %p198 = scmp.ne.s32.totalorder %s183, %s197
      %p199 = scmp.eq.s32.totalorder %s28, 0
      %p200 = por %p198, %p199
      %s202 = sadd.s32 %s201, 1
      %p205 = scmp.eq.s32.totalorder %s22, 1
      %p206 = scmp.ne.s32.totalorder %s201, %s203
      %p207 = scmp.eq.s32.totalorder %s22, 0
      %p208 = por %p206, %p207
      %p209 = scmp.ne.s32.totalorder %s201, %s203
      %p210 = scmp.eq.s32.totalorder %s27, 1
      %p211 = por %p209, %p210
      %p212 = scmp.ne.s32.totalorder %s203, %s204
      %p213 = scmp.eq.s32.totalorder %s27, 0
      %p214 = por %p212, %p213
      %p215 = scmp.ne.s32.totalorder %s203, %s204
      %p216 = scmp.eq.s32.totalorder %s28, 1
      %p217 = por %p215, %p216
      %p219 = scmp.ne.s32.totalorder %s204, %s218
      %p220 = scmp.eq.s32.totalorder %s28, 0
      %p221 = por %p219, %p220
      %s222 = ssub.s32 %s29, %s41
      %s223 = ssub.s32 %s30, %s37
      %s224 = sor.u32 %s222, %s223
      %p225 = scmp.eq.s32.totalorder %s224, 0
      %s227 = sadd.s32 %s226, 1
      %s228 = scalar_select %p225, %s226, %s227
      %p231 = pneg %p225
      %p232 = scmp.eq.s32.totalorder %s22, 1
      %p233 = por %p231, %p232
      %p234 = scmp.ne.s32.totalorder %s226, %s229
      %p235 = scmp.eq.s32.totalorder %s22, 0
      %p236 = por %p234, %p235
      %p237 = scmp.ne.s32.totalorder %s226, %s229
      %p238 = scmp.eq.s32.totalorder %s27, 1
      %p239 = por %p237, %p238
      %p240 = scmp.ne.s32.totalorder %s229, %s230
      %p241 = scmp.eq.s32.totalorder %s27, 0
      %p242 = por %p240, %p241
      %p243 = scmp.ne.s32.totalorder %s229, %s230
      %p244 = scmp.eq.s32.totalorder %s28, 1
      %p245 = por %p243, %p244
      %p247 = scmp.ne.s32.totalorder %s230, %s246
      %p248 = scmp.eq.s32.totalorder %s28, 0
      %p249 = por %p247, %p248
      %p250 = scmp.le.s32.totalorder 1, %s22
      %p251 = scmp.lt.s32.totalorder %s22, 3
      %p252 = pnand %p250, %p251
      %p253 = pneg %p252
      // Predicated region
      $region9: #{tpu_custom_call.1} parent=5 // pred_check
        _
      $region10: #{tpu_custom_call.1} parent=5 // pred_check_branch
        %255 = sbr.rel (%p252) target = $region12
      $region11: #{tpu_custom_call.1} parent=5 // pred_region
        %s256 = ssub.s32 %s22, 1
        // Predicated region
        $region13: #{tpu_custom_call.1} parent=11 // pred_check
          %p257 = pneg %p151
        $region14: #{tpu_custom_call.1} parent=11 // pred_check_branch
          %259 = sbr.rel (%p257) target = $region16
        $region15: #{tpu_custom_call.1} parent=11 // pred_region
          _
        $region16: #{tpu_custom_call.1} parent=11 // pred_fallthru
          _
        // Predicated region
        $region17: #{tpu_custom_call.1} parent=11 // pred_check
          %p260 = pneg %p172
        $region18: #{tpu_custom_call.1} parent=11 // pred_check_branch
          %262 = sbr.rel (%p260) target = $region20
        $region19: #{tpu_custom_call.1} parent=11 // pred_region
          _
        $region20: #{tpu_custom_call.1} parent=11 // pred_fallthru
          _
        // Predicated region
        $region21: #{tpu_custom_call.1} parent=11 // pred_check
          %p263 = pneg %p193
        $region22: #{tpu_custom_call.1} parent=11 // pred_check_branch
          %265 = sbr.rel (%p263) target = $region24
        $region23: #{tpu_custom_call.1} parent=11 // pred_region
          _
        $region24: #{tpu_custom_call.1} parent=11 // pred_fallthru
          _
        // Predicated region
        $region25: #{tpu_custom_call.1} parent=11 // pred_check
          %p266 = pneg %p214
        $region26: #{tpu_custom_call.1} parent=11 // pred_check_branch
          %268 = sbr.rel (%p266) target = $region28
        $region27: #{tpu_custom_call.1} parent=11 // pred_region
          _
        $region28: #{tpu_custom_call.1} parent=11 // pred_fallthru
          _
      $region12: #{tpu_custom_call.1} parent=5 // pred_fallthru
        _
      %p269 = scmp.lt.s32.totalorder %s22, 2
      // Predicated region
      $region29: #{tpu_custom_call.1} parent=5 // pred_check
        %p270 = pneg %p269
      $region30: #{tpu_custom_call.1} parent=5 // pred_check_branch
        %272 = sbr.rel (%p270) target = $region32
      $region31: #{tpu_custom_call.1} parent=5 // pred_region
        // Predicated region
        $region33: #{tpu_custom_call.1} parent=31 // pred_check
          %p273 = pneg %p56
        $region34: #{tpu_custom_call.1} parent=31 // pred_check_branch
          %275 = sbr.rel (%p273) target = $region36
        $region35: #{tpu_custom_call.1} parent=31 // pred_region
          %s276 = sand.u32 %s46, 1
          %s277 = scalar_lea.sflag [#allocation3], %s276
          %s278 = sand.u32 %s46, 1
          %s279 = smul.addr %s278, 4
          %s280 = scalar_lea.vmem [#allocation2], %s279
          %s282 = ssub.s32 64, 64
          %283 = vsyncadd %s277, %s282
          %s284 = sadd.s32 %s30, %s29
          %s285 = smul.addr %s284, 64
          %s286 = scalar_lea.hbm %s0, %s285
          %s288 = sshll.u32 %s280, 4
          %s289 = int_to_ptr.vmem [resolvable:$true] %s288
          %291 = dma.hbm_to_vmem [thread:$0]  %s286, 64, %s289, %s277
        $region36: #{tpu_custom_call.1} parent=31 // pred_fallthru
          _
        // Predicated region
        $region37: #{tpu_custom_call.1} parent=31 // pred_check
          %p292 = pneg %p90
        $region38: #{tpu_custom_call.1} parent=31 // pred_check_branch
          %294 = sbr.rel (%p292) target = $region40
        $region39: #{tpu_custom_call.1} parent=31 // pred_region
          %s295 = sand.u32 %s22, 1
          %s296 = scalar_lea.sflag [#allocation6], %s295
          %s297 = sand.u32 %s80, 1
          %s298 = smul.addr %s297, 4
          %s299 = scalar_lea.vmem [#allocation5], %s298
          %s300 = ssub.s32 %s30, 1
          %p301 = scmp.gt.s32.totalorder %s300, 0
          %s302 = scalar_select %p301, %s300, 0
          %s304 = ssub.s32 64, 64
          %305 = vsyncadd %s296, %s304
          %s306 = sadd.s32 %s302, %s29
          %s307 = smul.addr %s306, 64
          %s308 = scalar_lea.hbm %s1, %s307
          %s310 = sshll.u32 %s299, 4
          %s311 = int_to_ptr.vmem [resolvable:$true] %s310
          %313 = dma.hbm_to_vmem [thread:$0]  %s308, 64, %s311, %s296
        $region40: #{tpu_custom_call.1} parent=31 // pred_fallthru
          _
        // Predicated region
        $region41: #{tpu_custom_call.1} parent=31 // pred_check
          %p314 = pneg %p124
        $region42: #{tpu_custom_call.1} parent=31 // pred_check_branch
          %316 = sbr.rel (%p314) target = $region44
        $region43: #{tpu_custom_call.1} parent=31 // pred_region
          %s317 = sand.u32 %s22, 1
          %s318 = scalar_lea.sflag [#allocation6], %s317
          %s319 = sand.u32 %s114, 1
          %s320 = smul.addr %s319, 4
          %s321 = scalar_lea.vmem [#allocation7], %s320
          %s322 = sadd.s32 %s30, 1
          %p323 = scmp.lt.s32.totalorder %s322, 0
          %s324 = scalar_select %p323, %s322, 0
          %s326 = ssub.s32 64, 64
          %327 = vsyncadd %s318, %s326
          %s328 = sadd.s32 %s324, %s29
          %s329 = smul.addr %s328, 64
          %s330 = scalar_lea.hbm %s2, %s329
          %s332 = sshll.u32 %s321, 4
          %s333 = int_to_ptr.vmem [resolvable:$true] %s332
          %335 = dma.hbm_to_vmem [thread:$0]  %s330, 64, %s333, %s318
        $region44: #{tpu_custom_call.1} parent=31 // pred_fallthru
          _
      $region32: #{tpu_custom_call.1} parent=5 // pred_fallthru
        _
      %p336 = scmp.le.s32.totalorder 1, %s22
      %p337 = scmp.lt.s32.totalorder %s22, 3
      %p338 = pnand %p336, %p337
      %p339 = pneg %p338
      // Predicated region
      $region45: #{tpu_custom_call.1} parent=5 // pred_check
        _
      $region46: #{tpu_custom_call.1} parent=5 // pred_check_branch
        %341 = sbr.rel (%p338) target = $region48
      $region47: #{tpu_custom_call.1} parent=5 // pred_region
        %s342 = ssub.s32 %s22, 1
        %s343 = sand.u32 %s49, 1
        %s344 = scalar_lea.sflag [#allocation3], %s343
        %s345 = sand.u32 %s49, 1
        %s346 = smul.addr %s345, 4
        %s347 = scalar_lea.vmem [#allocation2], %s346
        // Predicated region
        $region49: #{tpu_custom_call.1} parent=47 // pred_check
          %p348 = pneg %p62
        $region50: #{tpu_custom_call.1} parent=47 // pred_check_branch
          %350 = sbr.rel (%p348) target = $region52
        $region51: #{tpu_custom_call.1} parent=47 // pred_region
          %351 = dma.done %s344, 64
        $region52: #{tpu_custom_call.1} parent=47 // pred_fallthru
          _
        %s352 = sand.u32 %s27, 1
        %s353 = scalar_lea.sflag [#allocation6], %s352
        %s354 = sand.u32 %s83, 1
        %s355 = smul.addr %s354, 4
        %s356 = scalar_lea.vmem [#allocation5], %s355
        // Predicated region
        $region53: #{tpu_custom_call.1} parent=47 // pred_check
          %p357 = pneg %p96
        $region54: #{tpu_custom_call.1} parent=47 // pred_check_branch
          %359 = sbr.rel (%p357) target = $region56
        $region55: #{tpu_custom_call.1} parent=47 // pred_region
          %360 = dma.done %s353, 64
        $region56: #{tpu_custom_call.1} parent=47 // pred_fallthru
          _
        %s361 = sand.u32 %s27, 1
        %s362 = scalar_lea.sflag [#allocation6], %s361
        %s363 = sand.u32 %s117, 1
        %s364 = smul.addr %s363, 4
        %s365 = scalar_lea.vmem [#allocation7], %s364
        // Predicated region
        $region57: #{tpu_custom_call.1} parent=47 // pred_check
          %p366 = pneg %p130
        $region58: #{tpu_custom_call.1} parent=47 // pred_check_branch
          %368 = sbr.rel (%p366) target = $region60
        $region59: #{tpu_custom_call.1} parent=47 // pred_region
          %369 = dma.done %s362, 64
        $region60: #{tpu_custom_call.1} parent=47 // pred_fallthru
          _
        %s370 = sand.u32 %s49, 1
        %s371 = scalar_lea.sflag [#allocation3], %s370
        %s372 = sand.u32 %s49, 1
        %s373 = smul.addr %s372, 4
        %s374 = scalar_lea.vmem [#allocation2], %s373
        %p375 = pneg %p62
        %p376 = pneg %p59
        %s377 = sand.u32 %s27, 1
        %s378 = scalar_lea.sflag [#allocation6], %s377
        %s379 = sand.u32 %s83, 1
        %s380 = smul.addr %s379, 4
        %s381 = scalar_lea.vmem [#allocation5], %s380
        %p382 = pneg %p96
        %p383 = pneg %p93
        %s384 = sand.u32 %s27, 1
        %s385 = scalar_lea.sflag [#allocation6], %s384
        %s386 = sand.u32 %s117, 1
        %s387 = smul.addr %s386, 4
        %s388 = scalar_lea.vmem [#allocation7], %s387
        %p389 = pneg %p130
        %p390 = pneg %p127
        %p391 = pneg %p151
        %p392 = pneg %p148
        %p393 = pneg %p172
        %p394 = pneg %p169
        %p395 = pneg %p193
        %p396 = pneg %p190
        %p397 = pneg %p214
        %p398 = pneg %p211
        %p399 = pneg %p242
        %p400 = pneg %p239
        %s401 = sand.u32 %s229, 1
        %s402 = scalar_lea.sflag [#allocation4], %s401
        %s403 = sand.u32 %s229, 1
        %s404 = smul.addr %s403, 4
        %s405 = scalar_lea.vmem [#allocation8], %s404
        %s406 = ssub.s32 %s32, 1
        %p407 = scmp.gt.s32.totalorder %s406, 0
        %s408 = scalar_select %p407, %s406, 0
        %s409 = sadd.s32 %s32, 1
        %p410 = scmp.lt.s32.totalorder %s409, 0
        %s411 = scalar_select %p410, %s409, 0
        %v412 = vld [vmem:[%s347] sm:$0xf]
        %v413 = vld [vmem:[%s356] sm:$0xf]
        %v414 = vld [vmem:[%s365] sm:$0xf]
        %416 = vrot.lane.b32.xlu0 %v413, 4
        %v417 = vpop.permute.xlu0 %416
        %420 = vrot.lane.b32.xlu0 %v412, 4
        %v421 = vpop.permute.xlu0 %420
        %424 = vrot.lane.b32.xlu0 %v414, 4
        %v425 = vpop.permute.xlu0 %424
        %vm427 = vcmask 31744
        %v428 = vsel %vm427, %v417, %v421
        %v429 = vsel %vm427, %v421, %v425
        %v430 = vlaneseq
        %v431 = vand.u32 %v430, 127
        %v432 = vadd.s32 %v431, 128
        %s433 = smul.u32 %s32, 128
        %s434 = ssub.s32 %s433, 4
        %v435 = vstv %s434
        %v436 = vadd.s32 %v435, %v431
        %v437 = vadd.s32 %v435, %v432
        %vm438 = vcmp.ge.s32.totalorder %v436, 0
        %vm439 = vcmp.ge.s32.totalorder %v437, 0
        %vm440 = vcmp.lt.s32.totalorder %v436, 16
        %vm441 = vcmp.lt.s32.totalorder %v437, 16
        %vm442 = vmand %vm438, %vm440
        %vm443 = vmand %vm439, %vm441
        %v444 = vsel %vm442, 1, 0
        %v445 = vsel %vm443, 1, 0
        %vm446 = vcmp.eq.s32.totalorder %v444, 1
        %vm447 = vcmp.eq.s32.totalorder %v445, 1
        %v448 = vsel %vm446, %v428, 0.0
        %v449 = vsel %vm447, %v429, 0.0
        %vm450 = vcmp.ge.f32.partialorder %v448, 0.0
        %vm451 = vcmp.ge.f32.partialorder %v449, 0.0
        %v452 = vmul.f32 %v448, 0.1
        %v453 = vmul.f32 %v449, 0.1
        %v454 = vsel %vm450, %v448, %v452
        %v455 = vsel %vm451, %v449, %v453
        %v456 = vld [vmem:[%s3] sm:$0xf]
        %s457 = scalar_lea.vmem %s3, 4
        %v458 = vld [vmem:[%s457] sm:$0xf]
        %461 = vrot.lane.b32.xlu0 %v454, 127
        %v462 = vpop.permute.xlu0 %461
        %463 = vrot.lane.b32.xlu0 %v455, 127
        %v464 = vpop.permute.xlu0 %463
        %vm465 = vcmask 1039360
        %v466 = vsel %vm465, %v462, %v464
        %v468 = vsel %vm427, %v458, 0
        %vm470 = vcmask 1043456
        %v471 = vsel %vm470, %v466, 0
        %v473 = vsel %vm470, %v464, 0
        %475 = vmatprep.subr.mxu0 %v473
        %476 = vmatpush1.msra.mxu0 %v471
        %477 = vmatprep.subr.mxu0 0.0
        %478 = vmatpush1.msra.mxu0 0.0
        %479 = vmatprep.subr.mxu0 0.0
        %480 = vmatpush1.msra.mxu0 0.0
        %481 = vmatprep.subr.mxu0 0.0
        %482 = vmatpush1.msra.mxu0 0.0
        %483 = vmatprep.subr.mxu0 0.0
        %484 = vmatpush1.msra.mxu0 0.0
        %485 = vmatprep.subr.mxu0 0.0
        %486 = vmatpush1.msra.mxu0 0.0
        %487 = vmatprep.subr.mxu0 0.0
        %488 = vmatpush1.msra.mxu0 0.0
        %489 = vmatprep.subr.mxu0 0.0
        %490 = vmatpush1.msra.mxu0 0.0
        %491 = vmatprep.subr.mxu0 0.0
        %492 = vmatpush1.msra.mxu0 0.0
        %493 = vmatprep.subr.mxu0 0.0
        %494 = vmatpush1.msra.mxu0 0.0
        %495 = vmatprep.subr.mxu0 0.0
        %496 = vmatpush1.msra.mxu0 0.0
        %497 = vmatprep.subr.mxu0 0.0
        %498 = vmatpush1.msra.mxu0 0.0
        %499 = vmatprep.subr.mxu0 0.0
        %500 = vmatpush1.msra.mxu0 0.0
        %501 = vmatprep.subr.mxu0 0.0
        %502 = vmatpush1.msra.mxu0 0.0
        %503 = vmatprep.subr.mxu0 0.0
        %504 = vmatpush1.msra.mxu0 0.0
        %505 = vmatprep.subr.mxu0 0.0
        %506 = vmatpush1.msra.mxu0 0.0
        %507 = vmatprep.subr.mxu0 0.0
        %508 = vmatpush1.msra.mxu0 0.0
        %509 = vmatprep.subr.mxu0 0.0
        %510 = vmatpush1.msra.mxu0 0.0
        %511 = vmatprep.subr.mxu0 0.0
        %512 = vmatpush1.msra.mxu0 0.0
        %513 = vmatprep.subr.mxu0 0.0
        %514 = vmatpush1.msra.mxu0 0.0
        %515 = vmatprep.subr.mxu0 0.0
        %516 = vmatpush1.msra.mxu0 0.0
        %517 = vmatprep.subr.mxu0 0.0
        %518 = vmatpush1.msra.mxu0 0.0
        %519 = vmatprep.subr.mxu0 0.0
        %520 = vmatpush1.msra.mxu0 0.0
        %521 = vmatprep.subr.mxu0 0.0
        %522 = vmatpush1.msra.mxu0 0.0
        %523 = vmatprep.subr.mxu0 0.0
        %524 = vmatpush1.msra.mxu0 0.0
        %525 = vmatprep.subr.mxu0 0.0
        %526 = vmatpush1.msra.mxu0 0.0
        %527 = vmatprep.subr.mxu0 0.0
        %528 = vmatpush1.msra.mxu0 0.0
        %529 = vmatprep.subr.mxu0 0.0
        %530 = vmatpush1.msra.mxu0 0.0
        %531 = vmatprep.subr.mxu0 0.0
        %532 = vmatpush1.msra.mxu0 0.0
        %533 = vmatprep.subr.mxu0 0.0
        %534 = vmatpush1.msra.mxu0 0.0
        %535 = vmatprep.subr.mxu0 0.0
        %536 = vmatpush1.msra.mxu0 0.0
        %537 = vmatprep.subr.mxu0 0.0
        %538 = vmatpush1.msra.mxu0 0.0
        %539 = vmatprep.mubr.f32.mxu0 0.0
        %540 = vmatmul.mubr.f32.gmra.mrb[0].mxu0 %v468
        %v541 = vpop.f32.mrb[0].mxu0
        %v542 = vadd.f32 0.0, %v541
        %v543 = vpop.f32.mrb[0].mxu0
        %v544 = vadd.f32 0.0, %v543
        %545 = vdwg.mxu0
        %v547 = vsel %vm427, %v456, 0
        %v549 = vsel %vm470, %v454, 0
        %v551 = vsel %vm470, %v455, 0
        %553 = vmatprep.subr.mxu0 %v551
        %554 = vmatpush1.msra.mxu0 %v549
        %555 = vmatprep.subr.mxu0 0.0
        %556 = vmatpush1.msra.mxu0 0.0
        %557 = vmatprep.subr.mxu0 0.0
        %558 = vmatpush1.msra.mxu0 0.0
        %559 = vmatprep.subr.mxu0 0.0
        %560 = vmatpush1.msra.mxu0 0.0
        %561 = vmatprep.subr.mxu0 0.0
        %562 = vmatpush1.msra.mxu0 0.0
        %563 = vmatprep.subr.mxu0 0.0
        %564 = vmatpush1.msra.mxu0 0.0
        %565 = vmatprep.subr.mxu0 0.0
        %566 = vmatpush1.msra.mxu0 0.0
        %567 = vmatprep.subr.mxu0 0.0
        %568 = vmatpush1.msra.mxu0 0.0
        %569 = vmatprep.subr.mxu0 0.0
        %570 = vmatpush1.msra.mxu0 0.0
        %571 = vmatprep.subr.mxu0 0.0
        %572 = vmatpush1.msra.mxu0 0.0
        %573 = vmatprep.subr.mxu0 0.0
        %574 = vmatpush1.msra.mxu0 0.0
        %575 = vmatprep.subr.mxu0 0.0
        %576 = vmatpush1.msra.mxu0 0.0
        %577 = vmatprep.subr.mxu0 0.0
        %578 = vmatpush1.msra.mxu0 0.0
        %579 = vmatprep.subr.mxu0 0.0
        %580 = vmatpush1.msra.mxu0 0.0
        %581 = vmatprep.subr.mxu0 0.0
        %582 = vmatpush1.msra.mxu0 0.0
        %583 = vmatprep.subr.mxu0 0.0
        %584 = vmatpush1.msra.mxu0 0.0
        %585 = vmatprep.subr.mxu0 0.0
        %586 = vmatpush1.msra.mxu0 0.0
        %587 = vmatprep.subr.mxu0 0.0
        %588 = vmatpush1.msra.mxu0 0.0
        %589 = vmatprep.subr.mxu0 0.0
        %590 = vmatpush1.msra.mxu0 0.0
        %591 = vmatprep.subr.mxu0 0.0
        %592 = vmatpush1.msra.mxu0 0.0
        %593 = vmatprep.subr.mxu0 0.0
        %594 = vmatpush1.msra.mxu0 0.0
        %595 = vmatprep.subr.mxu0 0.0
        %596 = vmatpush1.msra.mxu0 0.0
        %597 = vmatprep.subr.mxu0 0.0
        %598 = vmatpush1.msra.mxu0 0.0
        %599 = vmatprep.subr.mxu0 0.0
        %600 = vmatpush1.msra.mxu0 0.0
        %601 = vmatprep.subr.mxu0 0.0
        %602 = vmatpush1.msra.mxu0 0.0
        %603 = vmatprep.subr.mxu0 0.0
        %604 = vmatpush1.msra.mxu0 0.0
        %605 = vmatprep.subr.mxu0 0.0
        %606 = vmatpush1.msra.mxu0 0.0
        %607 = vmatprep.subr.mxu0 0.0
        %608 = vmatpush1.msra.mxu0 0.0
        %609 = vmatprep.subr.mxu0 0.0
        %610 = vmatpush1.msra.mxu0 0.0
        %611 = vmatprep.subr.mxu0 0.0
        %612 = vmatpush1.msra.mxu0 0.0
        %613 = vmatprep.subr.mxu0 0.0
        %614 = vmatpush1.msra.mxu0 0.0
        %615 = vmatprep.subr.mxu0 0.0
        %616 = vmatpush1.msra.mxu0 0.0
        %617 = vmatprep.mubr.f32.mxu0 0.0
        %618 = vmatmul.mubr.f32.gmra.mrb[0].mxu0 %v547
        %v619 = vpop.f32.mrb[0].mxu0
        %v620 = vadd.f32 %v542, %v619
        %v621 = vpop.f32.mrb[0].mxu0
        %v622 = vadd.f32 %v544, %v621
        %623 = vdwg.mxu0
        %s624 = scalar_lea.vmem %s3, 8
        %v625 = vld [vmem:[%s624] sm:$0xf]
        %626 = vrot.lane.b32.xlu0 %v454, 126
        %v627 = vpop.permute.xlu0 %626
        %628 = vrot.lane.b32.xlu0 %v455, 126
        %v629 = vpop.permute.xlu0 %628
        %vm630 = vcmask 1031168
        %v631 = vsel %vm630, %v627, %v629
        %v633 = vsel %vm427, %v625, 0
        %v635 = vsel %vm470, %v631, 0
        %v637 = vsel %vm470, %v629, 0
        %639 = vmatprep.subr.mxu0 %v637
        %640 = vmatpush1.msra.mxu0 %v635
        %641 = vmatprep.subr.mxu0 0.0
        %642 = vmatpush1.msra.mxu0 0.0
        %643 = vmatprep.subr.mxu0 0.0
        %644 = vmatpush1.msra.mxu0 0.0
        %645 = vmatprep.subr.mxu0 0.0
        %646 = vmatpush1.msra.mxu0 0.0
        %647 = vmatprep.subr.mxu0 0.0
        %648 = vmatpush1.msra.mxu0 0.0
        %649 = vmatprep.subr.mxu0 0.0
        %650 = vmatpush1.msra.mxu0 0.0
        %651 = vmatprep.subr.mxu0 0.0
        %652 = vmatpush1.msra.mxu0 0.0
        %653 = vmatprep.subr.mxu0 0.0
        %654 = vmatpush1.msra.mxu0 0.0
        %655 = vmatprep.subr.mxu0 0.0
        %656 = vmatpush1.msra.mxu0 0.0
        %657 = vmatprep.subr.mxu0 0.0
        %658 = vmatpush1.msra.mxu0 0.0
        %659 = vmatprep.subr.mxu0 0.0
        %660 = vmatpush1.msra.mxu0 0.0
        %661 = vmatprep.subr.mxu0 0.0
        %662 = vmatpush1.msra.mxu0 0.0
        %663 = vmatprep.subr.mxu0 0.0
        %664 = vmatpush1.msra.mxu0 0.0
        %665 = vmatprep.subr.mxu0 0.0
        %666 = vmatpush1.msra.mxu0 0.0
        %667 = vmatprep.subr.mxu0 0.0
        %668 = vmatpush1.msra.mxu0 0.0
        %669 = vmatprep.subr.mxu0 0.0
        %670 = vmatpush1.msra.mxu0 0.0
        %671 = vmatprep.subr.mxu0 0.0
        %672 = vmatpush1.msra.mxu0 0.0
        %673 = vmatprep.subr.mxu0 0.0
        %674 = vmatpush1.msra.mxu0 0.0
        %675 = vmatprep.subr.mxu0 0.0
        %676 = vmatpush1.msra.mxu0 0.0
        %677 = vmatprep.subr.mxu0 0.0
        %678 = vmatpush1.msra.mxu0 0.0
        %679 = vmatprep.subr.mxu0 0.0
        %680 = vmatpush1.msra.mxu0 0.0
        %681 = vmatprep.subr.mxu0 0.0
        %682 = vmatpush1.msra.mxu0 0.0
        %683 = vmatprep.subr.mxu0 0.0
        %684 = vmatpush1.msra.mxu0 0.0
        %685 = vmatprep.subr.mxu0 0.0
        %686 = vmatpush1.msra.mxu0 0.0
        %687 = vmatprep.subr.mxu0 0.0
        %688 = vmatpush1.msra.mxu0 0.0
        %689 = vmatprep.subr.mxu0 0.0
        %690 = vmatpush1.msra.mxu0 0.0
        %691 = vmatprep.subr.mxu0 0.0
        %692 = vmatpush1.msra.mxu0 0.0
        %693 = vmatprep.subr.mxu0 0.0
        %694 = vmatpush1.msra.mxu0 0.0
        %695 = vmatprep.subr.mxu0 0.0
        %696 = vmatpush1.msra.mxu0 0.0
        %697 = vmatprep.subr.mxu0 0.0
        %698 = vmatpush1.msra.mxu0 0.0
        %699 = vmatprep.subr.mxu0 0.0
        %700 = vmatpush1.msra.mxu0 0.0
        %701 = vmatprep.subr.mxu0 0.0
        %702 = vmatpush1.msra.mxu0 0.0
        %703 = vmatprep.mubr.f32.mxu0 0.0
        %704 = vmatmul.mubr.f32.gmra.mrb[0].mxu0 %v633
        %v705 = vpop.f32.mrb[0].mxu0
        %v706 = vadd.f32 0.0, %v705
        %v707 = vpop.f32.mrb[0].mxu0
        %v708 = vadd.f32 0.0, %v707
        %709 = vdwg.mxu0
        %v710 = vadd.f32 %v620, %v706
        %v711 = vadd.f32 %v622, %v708
        %v712 = vld [vmem:[%s5] sm:$0xf]
        %714 = vset.pattern.permute.xlu0 0
        %715 = vperm.xlu0 %714, %v712
        %v716 = vpop.permute.xlu0 %715
        %v718 = vadd.f32 %v710, %v716
        %v719 = vadd.f32 %v711, %v716
        %722 = vrot.lane.b32.xlu0 %v448, 127
        %v723 = vpop.permute.xlu0 %722
        %724 = vrot.lane.b32.xlu0 %v449, 127
        %v725 = vpop.permute.xlu0 %724
        %v726 = vsel %vm465, %v723, %v725
        %v729 = vadd.f32 %v718, %v726
        %v730 = vadd.f32 %v719, %v725
        %s731 = ssub.s32 %s433, 3
        %v732 = vstv %s731
        %v733 = vadd.s32 %v732, %v431
        %v734 = vadd.s32 %v732, %v432
        %vm735 = vcmp.ge.s32.totalorder %v733, 0
        %vm736 = vcmp.ge.s32.totalorder %v734, 0
        %vm737 = vcmp.lt.s32.totalorder %v733, 16
        %vm738 = vcmp.lt.s32.totalorder %v734, 16
        %vm739 = vmand %vm735, %vm737
        %vm740 = vmand %vm736, %vm738
        %v741 = vsel %vm739, 1, 0
        %v742 = vsel %vm740, 1, 0
        %vm743 = vcmp.eq.s32.totalorder %v741, 1
        %vm744 = vcmp.eq.s32.totalorder %v742, 1
        %v745 = vsel %vm743, %v729, 0.0
        %v746 = vsel %vm744, %v730, 0.0
        %vm747 = vcmp.ge.f32.partialorder %v745, 0.0
        %vm748 = vcmp.ge.f32.partialorder %v746, 0.0
        %v749 = vmul.f32 %v745, 0.1
        %v750 = vmul.f32 %v746, 0.1
        %v751 = vsel %vm747, %v745, %v749
        %v752 = vsel %vm748, %v746, %v750
        %v753 = vld [vmem:[%s4] sm:$0xf]
        %s754 = scalar_lea.vmem %s4, 4
        %v755 = vld [vmem:[%s754] sm:$0xf]
        %758 = vrot.lane.b32.xlu0 %v751, 125
        %v759 = vpop.permute.xlu0 %758
        %760 = vrot.lane.b32.xlu0 %v752, 125
        %v761 = vpop.permute.xlu0 %760
        %vm762 = vcmask 1022976
        %v763 = vsel %vm762, %v759, %v761
        %v765 = vsel %vm427, %v755, 0
        %v767 = vsel %vm470, %v763, 0
        %769 = vmatprep.subr.mxu0 0.0
        %770 = vmatpush1.msra.mxu0 %v767
        %771 = vmatprep.subr.mxu0 0.0
        %772 = vmatpush1.msra.mxu0 0.0
        %773 = vmatprep.subr.mxu0 0.0
        %774 = vmatpush1.msra.mxu0 0.0
        %775 = vmatprep.subr.mxu0 0.0
        %776 = vmatpush1.msra.mxu0 0.0
        %777 = vmatprep.subr.mxu0 0.0
        %778 = vmatpush1.msra.mxu0 0.0
        %779 = vmatprep.subr.mxu0 0.0
        %780 = vmatpush1.msra.mxu0 0.0
        %781 = vmatprep.subr.mxu0 0.0
        %782 = vmatpush1.msra.mxu0 0.0
        %783 = vmatprep.subr.mxu0 0.0
        %784 = vmatpush1.msra.mxu0 0.0
        %785 = vmatprep.subr.mxu0 0.0
        %786 = vmatpush1.msra.mxu0 0.0
        %787 = vmatprep.subr.mxu0 0.0
        %788 = vmatpush1.msra.mxu0 0.0
        %789 = vmatprep.subr.mxu0 0.0
        %790 = vmatpush1.msra.mxu0 0.0
        %791 = vmatprep.subr.mxu0 0.0
        %792 = vmatpush1.msra.mxu0 0.0
        %793 = vmatprep.subr.mxu0 0.0
        %794 = vmatpush1.msra.mxu0 0.0
        %795 = vmatprep.subr.mxu0 0.0
        %796 = vmatpush1.msra.mxu0 0.0
        %797 = vmatprep.subr.mxu0 0.0
        %798 = vmatpush1.msra.mxu0 0.0
        %799 = vmatprep.subr.mxu0 0.0
        %800 = vmatpush1.msra.mxu0 0.0
        %801 = vmatprep.subr.mxu0 0.0
        %802 = vmatpush1.msra.mxu0 0.0
        %803 = vmatprep.subr.mxu0 0.0
        %804 = vmatpush1.msra.mxu0 0.0
        %805 = vmatprep.subr.mxu0 0.0
        %806 = vmatpush1.msra.mxu0 0.0
        %807 = vmatprep.subr.mxu0 0.0
        %808 = vmatpush1.msra.mxu0 0.0
        %809 = vmatprep.subr.mxu0 0.0
        %810 = vmatpush1.msra.mxu0 0.0
        %811 = vmatprep.subr.mxu0 0.0
        %812 = vmatpush1.msra.mxu0 0.0
        %813 = vmatprep.subr.mxu0 0.0
        %814 = vmatpush1.msra.mxu0 0.0
        %815 = vmatprep.subr.mxu0 0.0
        %816 = vmatpush1.msra.mxu0 0.0
        %817 = vmatprep.subr.mxu0 0.0
        %818 = vmatpush1.msra.mxu0 0.0
        %819 = vmatprep.subr.mxu0 0.0
        %820 = vmatpush1.msra.mxu0 0.0
        %821 = vmatprep.subr.mxu0 0.0
        %822 = vmatpush1.msra.mxu0 0.0
        %823 = vmatprep.subr.mxu0 0.0
        %824 = vmatpush1.msra.mxu0 0.0
        %825 = vmatprep.subr.mxu0 0.0
        %826 = vmatpush1.msra.mxu0 0.0
        %827 = vmatprep.subr.mxu0 0.0
        %828 = vmatpush1.msra.mxu0 0.0
        %829 = vmatprep.subr.mxu0 0.0
        %830 = vmatpush1.msra.mxu0 0.0
        %831 = vmatprep.subr.mxu0 0.0
        %832 = vmatpush1.msra.mxu0 0.0
        %833 = vmatprep.mubr.f32.mxu0 0.0
        %834 = vmatmul.mubr.f32.gmra.mrb[0].mxu0 %v765
        %v835 = vpop.f32.mrb[0].mxu0
        %v836 = vadd.f32 0.0, %v835
        %v837 = vpop.f32.mrb[0].mxu0
        %838 = vdwg.mxu0
        %v840 = vsel %vm427, %v753, 0
        %v842 = vsel %vm470, %v751, 0
        %844 = vmatprep.subr.mxu0 0.0
        %845 = vmatpush1.msra.mxu0 %v842
        %846 = vmatprep.subr.mxu0 0.0
        %847 = vmatpush1.msra.mxu0 0.0
        %848 = vmatprep.subr.mxu0 0.0
        %849 = vmatpush1.msra.mxu0 0.0
        %850 = vmatprep.subr.mxu0 0.0
        %851 = vmatpush1.msra.mxu0 0.0
        %852 = vmatprep.subr.mxu0 0.0
        %853 = vmatpush1.msra.mxu0 0.0
        %854 = vmatprep.subr.mxu0 0.0
        %855 = vmatpush1.msra.mxu0 0.0
        %856 = vmatprep.subr.mxu0 0.0
        %857 = vmatpush1.msra.mxu0 0.0
        %858 = vmatprep.subr.mxu0 0.0
        %859 = vmatpush1.msra.mxu0 0.0
        %860 = vmatprep.subr.mxu0 0.0
        %861 = vmatpush1.msra.mxu0 0.0
        %862 = vmatprep.subr.mxu0 0.0
        %863 = vmatpush1.msra.mxu0 0.0
        %864 = vmatprep.subr.mxu0 0.0
        %865 = vmatpush1.msra.mxu0 0.0
        %866 = vmatprep.subr.mxu0 0.0
        %867 = vmatpush1.msra.mxu0 0.0
        %868 = vmatprep.subr.mxu0 0.0
        %869 = vmatpush1.msra.mxu0 0.0
        %870 = vmatprep.subr.mxu0 0.0
        %871 = vmatpush1.msra.mxu0 0.0
        %872 = vmatprep.subr.mxu0 0.0
        %873 = vmatpush1.msra.mxu0 0.0
        %874 = vmatprep.subr.mxu0 0.0
        %875 = vmatpush1.msra.mxu0 0.0
        %876 = vmatprep.subr.mxu0 0.0
        %877 = vmatpush1.msra.mxu0 0.0
        %878 = vmatprep.subr.mxu0 0.0
        %879 = vmatpush1.msra.mxu0 0.0
        %880 = vmatprep.subr.mxu0 0.0
        %881 = vmatpush1.msra.mxu0 0.0
        %882 = vmatprep.subr.mxu0 0.0
        %883 = vmatpush1.msra.mxu0 0.0
        %884 = vmatprep.subr.mxu0 0.0
        %885 = vmatpush1.msra.mxu0 0.0
        %886 = vmatprep.subr.mxu0 0.0
        %887 = vmatpush1.msra.mxu0 0.0
        %888 = vmatprep.subr.mxu0 0.0
        %889 = vmatpush1.msra.mxu0 0.0
        %890 = vmatprep.subr.mxu0 0.0
        %891 = vmatpush1.msra.mxu0 0.0
        %892 = vmatprep.subr.mxu0 0.0
        %893 = vmatpush1.msra.mxu0 0.0
        %894 = vmatprep.subr.mxu0 0.0
        %895 = vmatpush1.msra.mxu0 0.0
        %896 = vmatprep.subr.mxu0 0.0
        %897 = vmatpush1.msra.mxu0 0.0
        %898 = vmatprep.subr.mxu0 0.0
        %899 = vmatpush1.msra.mxu0 0.0
        %900 = vmatprep.subr.mxu0 0.0
        %901 = vmatpush1.msra.mxu0 0.0
        %902 = vmatprep.subr.mxu0 0.0
        %903 = vmatpush1.msra.mxu0 0.0
        %904 = vmatprep.subr.mxu0 0.0
        %905 = vmatpush1.msra.mxu0 0.0
        %906 = vmatprep.subr.mxu0 0.0
        %907 = vmatpush1.msra.mxu0 0.0
        %908 = vmatprep.mubr.f32.mxu0 0.0
        %909 = vmatmul.mubr.f32.gmra.mrb[0].mxu0 %v840
        %v910 = vpop.f32.mrb[0].mxu0
        %v911 = vadd.f32 %v836, %v910
        %v912 = vpop.f32.mrb[0].mxu0
        %913 = vdwg.mxu0
        %s914 = scalar_lea.vmem %s4, 8
        %v915 = vld [vmem:[%s914] sm:$0xf]
        %916 = vrot.lane.b32.xlu0 %v751, 122
        %v917 = vpop.permute.xlu0 %916
        %918 = vrot.lane.b32.xlu0 %v752, 122
        %v919 = vpop.permute.xlu0 %918
        %vm920 = vcmask 998400
        %v921 = vsel %vm920, %v917, %v919
        %v923 = vsel %vm427, %v915, 0
        %v925 = vsel %vm470, %v921, 0
        %927 = vmatprep.subr.mxu0 0.0
        %928 = vmatpush1.msra.mxu0 %v925
        %929 = vmatprep.subr.mxu0 0.0
        %930 = vmatpush1.msra.mxu0 0.0
        %931 = vmatprep.subr.mxu0 0.0
        %932 = vmatpush1.msra.mxu0 0.0
        %933 = vmatprep.subr.mxu0 0.0
        %934 = vmatpush1.msra.mxu0 0.0
        %935 = vmatprep.subr.mxu0 0.0
        %936 = vmatpush1.msra.mxu0 0.0
        %937 = vmatprep.subr.mxu0 0.0
        %938 = vmatpush1.msra.mxu0 0.0
        %939 = vmatprep.subr.mxu0 0.0
        %940 = vmatpush1.msra.mxu0 0.0
        %941 = vmatprep.subr.mxu0 0.0
        %942 = vmatpush1.msra.mxu0 0.0
        %943 = vmatprep.subr.mxu0 0.0
        %944 = vmatpush1.msra.mxu0 0.0
        %945 = vmatprep.subr.mxu0 0.0
        %946 = vmatpush1.msra.mxu0 0.0
        %947 = vmatprep.subr.mxu0 0.0
        %948 = vmatpush1.msra.mxu0 0.0
        %949 = vmatprep.subr.mxu0 0.0
        %950 = vmatpush1.msra.mxu0 0.0
        %951 = vmatprep.subr.mxu0 0.0
        %952 = vmatpush1.msra.mxu0 0.0
        %953 = vmatprep.subr.mxu0 0.0
        %954 = vmatpush1.msra.mxu0 0.0
        %955 = vmatprep.subr.mxu0 0.0
        %956 = vmatpush1.msra.mxu0 0.0
        %957 = vmatprep.subr.mxu0 0.0
        %958 = vmatpush1.msra.mxu0 0.0
        %959 = vmatprep.subr.mxu0 0.0
        %960 = vmatpush1.msra.mxu0 0.0
        %961 = vmatprep.subr.mxu0 0.0
        %962 = vmatpush1.msra.mxu0 0.0
        %963 = vmatprep.subr.mxu0 0.0
        %964 = vmatpush1.msra.mxu0 0.0
        %965 = vmatprep.subr.mxu0 0.0
        %966 = vmatpush1.msra.mxu0 0.0
        %967 = vmatprep.subr.mxu0 0.0
        %968 = vmatpush1.msra.mxu0 0.0
        %969 = vmatprep.subr.mxu0 0.0
        %970 = vmatpush1.msra.mxu0 0.0
        %971 = vmatprep.subr.mxu0 0.0
        %972 = vmatpush1.msra.mxu0 0.0
        %973 = vmatprep.subr.mxu0 0.0
        %974 = vmatpush1.msra.mxu0 0.0
        %975 = vmatprep.subr.mxu0 0.0
        %976 = vmatpush1.msra.mxu0 0.0
        %977 = vmatprep.subr.mxu0 0.0
        %978 = vmatpush1.msra.mxu0 0.0
        %979 = vmatprep.subr.mxu0 0.0
        %980 = vmatpush1.msra.mxu0 0.0
        %981 = vmatprep.subr.mxu0 0.0
        %982 = vmatpush1.msra.mxu0 0.0
        %983 = vmatprep.subr.mxu0 0.0
        %984 = vmatpush1.msra.mxu0 0.0
        %985 = vmatprep.subr.mxu0 0.0
        %986 = vmatpush1.msra.mxu0 0.0
        %987 = vmatprep.subr.mxu0 0.0
        %988 = vmatpush1.msra.mxu0 0.0
        %989 = vmatprep.subr.mxu0 0.0
        %990 = vmatpush1.msra.mxu0 0.0
        %991 = vmatprep.mubr.f32.mxu0 0.0
        %992 = vmatmul.mubr.f32.gmra.mrb[0].mxu0 %v923
        %v993 = vpop.f32.mrb[0].mxu0
        %v994 = vadd.f32 0.0, %v993
        %v995 = vpop.f32.mrb[0].mxu0
        %996 = vdwg.mxu0
        %v997 = vadd.f32 %v911, %v994
        %v998 = vld [vmem:[%s6] sm:$0xf]
        %1000 = vset.pattern.permute.xlu0 0
        %1001 = vperm.xlu0 %1000, %v998
        %v1002 = vpop.permute.xlu0 %1001
        %v1004 = vadd.f32 %v997, %v1002
        %1007 = vrot.lane.b32.xlu0 %v745, 125
        %v1008 = vpop.permute.xlu0 %1007
        %1009 = vrot.lane.b32.xlu0 %v746, 125
        %v1010 = vpop.permute.xlu0 %1009
        %v1011 = vsel %vm762, %v1008, %v1010
        %v1013 = vadd.f32 %v1004, %v1011
        %1014 = vst [vmem:[%s405] sm:$0xf] %v1013
        %s1015 = sand.u32 %s229, 1
        %s1016 = scalar_lea.sflag [#allocation4], %s1015
        %s1017 = sand.u32 %s229, 1
        %s1018 = smul.addr %s1017, 4
        %s1019 = scalar_lea.vmem [#allocation8], %s1018
        // Predicated region
        $region61: #{tpu_custom_call.1} parent=47 // pred_check
          %p1020 = pneg %p239
        $region62: #{tpu_custom_call.1} parent=47 // pred_check_branch
          %1022 = sbr.rel (%p1020) target = $region64
        $region63: #{tpu_custom_call.1} parent=47 // pred_region
          %s1024 = ssub.s32 64, 64
          %1025 = vsyncadd %s1016, %s1024
          %s1026 = sadd.s32 %s32, %s31
          %s1027 = smul.addr %s1026, 64
          %s1028 = scalar_lea.hbm %s7, %s1027
          %s1030 = sshll.u32 %s1019, 4
          %s1031 = int_to_ptr.vmem [resolvable:$true] %s1030
          %1033 = dma.vmem_to_hbm [thread:$0]  %s1031, 64, %s1028, %s1016
        $region64: #{tpu_custom_call.1} parent=47 // pred_fallthru
          _
      $region48: #{tpu_custom_call.1} parent=5 // pred_fallthru
        _
      %p1034 = scmp.le.s32.totalorder 2, %s22
      // Predicated region
      $region65: #{tpu_custom_call.1} parent=5 // pred_check
        %p1035 = pneg %p1034
      $region66: #{tpu_custom_call.1} parent=5 // pred_check_branch
        %1037 = sbr.rel (%p1035) target = $region68
      $region67: #{tpu_custom_call.1} parent=5 // pred_region
        %s1038 = ssub.s32 %s22, 2
        // Predicated region
        $region69: #{tpu_custom_call.1} parent=67 // pred_check
          %p1039 = pneg %p245
        $region70: #{tpu_custom_call.1} parent=67 // pred_check_branch
          %1041 = sbr.rel (%p1039) target = $region72
        $region71: #{tpu_custom_call.1} parent=67 // pred_region
          %s1042 = sand.u32 %s230, 1
          %s1043 = scalar_lea.sflag [#allocation4], %s1042
          %s1044 = sand.u32 %s230, 1
          %s1045 = smul.addr %s1044, 4
          %s1046 = scalar_lea.vmem [#allocation8], %s1045
          %1047 = dma.done %s1043, 64
        $region72: #{tpu_custom_call.1} parent=67 // pred_fallthru
          _
      $region68: #{tpu_custom_call.1} parent=5 // pred_fallthru
        _
    $region6: #{tpu_custom_call.1} parent=1 // loop_footer
      %s26 = sadd.s32 1, %s22
    $region7: #{tpu_custom_call.1} parent=1 // loop_footer_branch
      %21 = sbr.rel target = $region3
    $region8: #{tpu_custom_call.1} parent=1 // loop_exit
      _
    %1048 = vsyncpa [#allocation3], 1
    %s1049 = scalar_lea.sflag [#allocation3], 1
    %1050 = vsyncpa %s1049, 1
    %1051 = vsyncpa [#allocation6], 1
    %s1052 = scalar_lea.sflag [#allocation6], 1
    %1053 = vsyncpa %s1052, 1
    %1054 = vsyncpa [#allocation4], 1
    %s1055 = scalar_lea.sflag [#allocation4], 1
    %1056 = vsyncpa %s1055, 1

</llo_original>
